<compile_context>
chip_gen: v5e
topology: v5e:2x2
jax: 0.10.0
libtpu: 0.0.40
codegen_flags: <defaults>
</compile_context>

<pallas_src>
import functools

import jax
import jax.numpy as jnp
from jax.experimental import pallas as pl
from jax.experimental.pallas import tpu as pltpu

LN_EPS = 1e-5


def _patch_merge_kernel(x_ref, w_ref, b_ref, o_ref, *, bf16_center,
                        flatten_tokens):
    """One grid step: LayerNorm(4C) + Linear(4C->2C) on TR merged rows.

    x_ref: (TR, 2, W2, 2C)  plane 0 = even image rows ([x0|x2] channels per
                            token), plane 1 = odd image rows ([x1|x3]).
    w_ref: (2, 2C, 2C)      gamma-folded reduction weight; w_ref[0] holds the
                            rows for the even-plane channels, w_ref[1] for the
                            odd-plane channels (matmul / parameter dtype).
    b_ref: (1, 2C)          beta @ W.T, float32.
    o_ref: (TR, W2, 2C)
    """
    tr, _, w2, c2 = x_ref.shape
    inv_c4 = 1.0 / (2 * c2)

    even = x_ref[:, 0]                                   # (TR, W2, 2C)
    odd = x_ref[:, 1]                                    # (TR, W2, 2C)
    if flatten_tokens:
        # W2 % 8 == 0: merging (TR, W2) into the sublane dim is layout-free.
        even = even.reshape(tr * w2, c2)
        odd = odd.reshape(tr * w2, c2)

    # LayerNorm statistics strictly in f32, per-half sums combined (no 4C
    # lane concatenate ever materialized).
    e32 = even.astype(jnp.float32)
    o32 = odd.astype(jnp.float32)
    mean = (jnp.sum(e32, axis=-1, keepdims=True)
            + jnp.sum(o32, axis=-1, keepdims=True)) * inv_c4

    if bf16_center:
        # One-pass f32 stats, bf16 center/scale (halves the full-tile
        # temporaries and VPU width on bf16-VALU chips).
        msq = (jnp.sum(e32 * e32, axis=-1, keepdims=True)
               + jnp.sum(o32 * o32, axis=-1, keepdims=True)) * inv_c4
        var = jnp.maximum(msq - mean * mean, 0.0)
        rstd = jax.lax.rsqrt(var + LN_EPS)
        mean_c = mean.astype(jnp.bfloat16)
        rstd_c = rstd.astype(jnp.bfloat16)
        xh_e = (even.astype(jnp.bfloat16) - mean_c) * rstd_c
        xh_o = (odd.astype(jnp.bfloat16) - mean_c) * rstd_c
    else:
        ce = e32 - mean
        co = o32 - mean
        var = (jnp.sum(ce * ce, axis=-1, keepdims=True)
               + jnp.sum(co * co, axis=-1, keepdims=True)) * inv_c4
        rstd = jax.lax.rsqrt(var + LN_EPS)
        xh_e = ce * rstd
        xh_o = co * rstd

    w_e = w_ref[0]                                       # (2C, 2C)
    w_o = w_ref[1]                                       # (2C, 2C)
    xh_e = xh_e.astype(w_e.dtype)
    xh_o = xh_o.astype(w_o.dtype)

    if flatten_tokens:
        y = jnp.dot(xh_e, w_e, preferred_element_type=jnp.float32)
        y = y + jnp.dot(xh_o, w_o, preferred_element_type=jnp.float32)
        y = y + b_ref[...]                               # (1, 2C) broadcast
        o_ref[...] = y.reshape(o_ref.shape).astype(o_ref.dtype)
    else:
        # Keep the tile 3-D: contract the last axis directly so no (tr, w2)
        # sublane relayout is materialized when W2 is not a multiple of 8.
        dn = (((2,), (0,)), ((), ()))
        y = jax.lax.dot_general(xh_e, w_e, dn,
                                preferred_element_type=jnp.float32)
        y = y + jax.lax.dot_general(xh_o, w_o, dn,
                                    preferred_element_type=jnp.float32)
        y = y + jnp.reshape(b_ref[...], (1, 1, -1))
        o_ref[...] = y.astype(o_ref.dtype)


def prepare_patch_merging_params(norm_weight, norm_bias, red_weight):
    """Fold the LayerNorm affine into the reduction weight (call once).

    norm_weight, norm_bias: (4C,)  LayerNorm gamma / beta.
    red_weight: (2C, 4C) as stored by nn.Linear(4*dim, 2*dim, bias=False).

    Returns:
      w_fold: (2, 2C, 2C) in red_weight.dtype.  w_fold[0] = gamma-scaled rows
              of W.T for the even-row-plane channels ([x0 | x2]); w_fold[1]
              for the odd-row-plane channels ([x1 | x3]).
      b_fold: (1, 2C) float32, beta @ W.T.
    """
    c4 = norm_weight.shape[0]
    c = c4 // 4
    c2 = 2 * c
    w_t = red_weight.astype(jnp.float32).T                     # (4C, 2C)
    gamma = norm_weight.astype(jnp.float32)
    beta = norm_bias.astype(jnp.float32)
    w_scaled = gamma[:, None] * w_t
    # kernel channel order: even plane = [x0 | x2], odd plane = [x1 | x3]
    perm = jnp.concatenate([jnp.arange(0, c), jnp.arange(2 * c, 3 * c),
                            jnp.arange(c, 2 * c), jnp.arange(3 * c, 4 * c)])
    w_fold = w_scaled[perm].reshape(2, c2, c2).astype(red_weight.dtype)
    b_fold = (beta @ w_t).reshape(1, c2).astype(jnp.float32)
    return w_fold, b_fold


def _vmem_capacity_bytes():
    try:
        return int(pltpu.get_tpu_info().vmem_capacity_bytes)
    except Exception:
        return 64 << 20            # conservative (v7x-sized) fallback


def _has_bf16_valu():
    try:
        return "v5" not in jax.devices()[0].device_kind.lower()
    except Exception:
        return True


@functools.partial(jax.jit, static_argnames=("input_resolution",))
def patch_merging_forward(x, w_fold, b_fold, *, input_resolution):
    """x: (B, H*W, C) -> (B, H/2*W/2, 2C).  Params from prepare_patch_merging_params."""
    H, W = input_resolution
    B, L, C = x.shape
    assert L == H * W, "input feature has wrong size"
    assert H % 2 == 0 and W % 2 == 0, f"x size ({H}*{W}) are not even."
    H2, W2 = H // 2, W // 2
    C2, C4 = 2 * C, 4 * C
    assert w_fold.shape == (2, C2, C2) and b_fold.shape == (1, C2)

    n_rows = B * H2
    # Free view of the original layout: plane 0 = even image rows, plane 1 = odd.
    x5 = x.reshape(n_rows, 2, W2, C2)

    itemsize = jnp.dtype(x.dtype).itemsize
    w_itemsize = jnp.dtype(w_fold.dtype).itemsize
    row_in_bytes = 2 * W2 * C2 * itemsize          # input bytes per merged row
    row_out_bytes = W2 * C2 * itemsize
    w_bytes = 2 * C2 * C2 * w_itemsize

    # ---- generation-aware VMEM budget ------------------------------------
    vmem_cap = _vmem_capacity_bytes()
    big_vmem = vmem_cap >= (96 << 20)              # v5e/v6e 128 MiB vs v7x 64 MiB
    vmem_budget = (72 << 20) if big_vmem else (26 << 20)

    single_buffer_w = w_bytes > (2 << 20)          # big weight: keep one copy
    w_resident = w_bytes if single_buffer_w else 2 * w_bytes

    def _resident_bytes(tr):
        in_b = tr * row_in_bytes                   # input tile (double-buffered)
        out_b = tr * row_out_bytes                 # output tile (double-buffered)
        f32_tmp = 6 * tr * W2 * C2 * 4             # LN / matmul f32 intermediates
        return 2 * (in_b + out_b) + f32_tmp + w_resident

    # ---- tile sizing -------------------------------------------------------
    # ~3 MiB of streamed input per grid step (amortizes the ~0.35 us/step
    # pipeline overhead), but always >= 8 steps (>= 4 per v7x TensorCore, even
    # count for the 2-core split) so DMA-in / compute / writeback overlap.
    target_in_bytes = 3 << 20
    tile_r = max(1, min(target_in_bytes // row_in_bytes, n_rows))
    steps = max(pl.cdiv(n_rows, tile_r), min(8, n_rows))
    if steps % 2 and steps < n_rows:
        steps += 1
    tile_r = pl.cdiv(n_rows, steps)
    while tile_r > 1 and _resident_bytes(tile_r) > vmem_budget:
        tile_r = max(1, tile_r // 2)
    grid = pl.cdiv(n_rows, tile_r)
    vmem_limit = int(min(max(_resident_bytes(tile_r) + (8 << 20), 32 << 20),
                         vmem_cap - vmem_cap // 8))

    flatten_tokens = (W2 % 8 == 0)                 # sublane merge is free
    bf16_center = (x.dtype == jnp.bfloat16 and w_fold.dtype == jnp.bfloat16
                   and _has_bf16_valu())

    w_spec_kwargs = {}
    if single_buffer_w:
        # Constant index_map -> fetched once; single buffer halves its VMEM.
        w_spec_kwargs["pipeline_mode"] = pl.Buffered(1)

    m_tokens = B * H2 * W2
    cost = pl.CostEstimate(
        flops=2 * m_tokens * C4 * C2 + 8 * m_tokens * C4,
        transcendentals=m_tokens,
        bytes_accessed=(x.size * itemsize + w_bytes + b_fold.size * 4
                        + m_tokens * C2 * itemsize),
    )

    kernel = functools.partial(_patch_merge_kernel, bf16_center=bf16_center,
                               flatten_tokens=flatten_tokens)

    out = pl.pallas_call(
        kernel,
        out_shape=jax.ShapeDtypeStruct((n_rows, W2, C2), x.dtype),
        grid_spec=pltpu.PrefetchScalarGridSpec(
            num_scalar_prefetch=0,
            grid=(grid,),
            in_specs=[
                pl.BlockSpec((tile_r, 2, W2, C2), lambda i: (i, 0, 0, 0)),
                pl.BlockSpec((2, C2, C2), lambda i: (0, 0, 0), **w_spec_kwargs),
                pl.BlockSpec((1, C2), lambda i: (0, 0)),
            ],
            out_specs=pl.BlockSpec((tile_r, W2, C2), lambda i: (i, 0, 0)),
        ),
        compiler_params=pltpu.CompilerParams(
            dimension_semantics=("parallel",),
            vmem_limit_bytes=vmem_limit),
        cost_estimate=cost,
    )(x5, w_fold, b_fold)

    return out.reshape(B, H2 * W2, C2)


def _reference(x, input_resolution, norm_weight, norm_bias, red_weight):
    """Straightforward JAX port of the PyTorch module (f32 math)."""
    H, W = input_resolution
    B, L, C = x.shape
    xr = x.astype(jnp.float32).reshape(B, H, W, C)
    xm = jnp.concatenate(
        [xr[:, 0::2, 0::2, :], xr[:, 1::2, 0::2, :],
         xr[:, 0::2, 1::2, :], xr[:, 1::2, 1::2, :]], axis=-1
    ).reshape(B, -1, 4 * C)
    mean = jnp.mean(xm, axis=-1, keepdims=True)
    var = jnp.mean((xm - mean) ** 2, axis=-1, keepdims=True)
    xn = (xm - mean) * jax.lax.rsqrt(var + LN_EPS)
    xn = xn * norm_weight.astype(jnp.float32) + norm_bias.astype(jnp.float32)
    return xn @ red_weight.T.astype(jnp.float32)


if __name__ == "__main__":
    key = jax.random.PRNGKey(0)
    k_x, k_w, k_g, k_b = jax.random.split(key, 4)

    B, C = 2, 4
    H, W = 16, 16
    res = (H, W)

    x = jax.random.normal(k_x, (B, H * W, C), dtype=jnp.float32)
    red_weight = (jax.random.normal(k_w, (2 * C, 4 * C), dtype=jnp.float32)
                  * (1.0 / jnp.sqrt(4.0 * C)))
    norm_weight = 1.0 + 0.1 * jax.random.normal(k_g, (4 * C,), dtype=jnp.float32)
    norm_bias = 0.1 * jax.random.normal(k_b, (4 * C,), dtype=jnp.float32)

    # ---- float32 parameters (f32 LN + center/scale, MXU default precision) --
    w_fold, b_fold = prepare_patch_merging_params(norm_weight, norm_bias,
                                                  red_weight)
    out = patch_merging_forward(x, w_fold, b_fold, input_resolution=res)
    out = jax.block_until_ready(out)
    ref = _reference(x, res, norm_weight, norm_bias, red_weight)
    assert out.shape == (B, (H // 2) * (W // 2), 2 * C), out.shape
    # Tolerance: default TPU matmul precision rounds f32 operands toward bf16
    # and the folded-affine grouping differs from the reference; real bugs
    # (e.g. a wrong channel permutation) show up at O(1).
    err = float(jnp.max(jnp.abs(out - ref.astype(out.dtype))))
    assert jnp.allclose(out, ref.astype(out.dtype), atol=7.5e-2, rtol=7.5e-2), err

    # ---- bfloat16 parameters (f32 LN stats, bf16 center/scale + MXU) --------
    x_bf = x.astype(jnp.bfloat16)
    w_fold_bf, b_fold_bf = prepare_patch_merging_params(
        norm_weight.astype(jnp.bfloat16), norm_bias.astype(jnp.bfloat16),
        red_weight.astype(jnp.bfloat16))
    out_bf = patch_merging_forward(x_bf, w_fold_bf, b_fold_bf,
                                   input_resolution=res)
    out_bf = jax.block_until_ready(out_bf)
    ref_bf = _reference(x_bf, res, norm_weight.astype(jnp.bfloat16),
                        norm_bias.astype(jnp.bfloat16),
                        red_weight.astype(jnp.bfloat16))
    err_bf = float(jnp.max(jnp.abs(out_bf.astype(jnp.float32) - ref_bf)))
    assert out_bf.shape == (B, (H // 2) * (W // 2), 2 * C), out_bf.shape
    assert jnp.allclose(out_bf.astype(jnp.float32), ref_bf,
                        atol=2.0e-1, rtol=2.0e-1), err_bf

    print("KERNEL_OK")
</pallas_src>

<mosaic_0001>
module attributes {stable_mosaic.version = 11 : i64} {
  func.func @_patch_merge_kernel(%arg0: i32, %arg1: memref<2x2x8x8xf32, #tpu.memory_space<vmem>>, %arg2: memref<2x8x8xf32, #tpu.memory_space<vmem>>, %arg3: memref<1x8xf32, #tpu.memory_space<vmem>>, %arg4: memref<2x8x8xf32, #tpu.memory_space<vmem>>) attributes {dimension_semantics = [#tpu.dimension_semantics<parallel>], iteration_bounds = array<i64: 8>, scalar_prefetch = 0 : i64, scratch_operands = 0 : i64, tpu.core_type = #tpu.core_type<tc>, window_params = [{transform_indices = @transform_0, window_bounds = array<i64: 2, 2, 8, 8>}, {pipeline_mode = #tpu.pipeline_mode<synchronous>, transform_indices = @transform_1, window_bounds = array<i64: 2, 8, 8>}, {pipeline_mode = #tpu.pipeline_mode<synchronous>, transform_indices = @transform_2, window_bounds = array<i64: 1, 8>}, {transform_indices = @transform_3, window_bounds = array<i64: 2, 8, 8>}]} {
    %c0 = arith.constant 0 : index
    %c0_0 = arith.constant 0 : index
    %c0_1 = arith.constant 0 : index
    %c0_2 = arith.constant 0 : index
    %0 = vector.load %arg1[%c0, %c0_0, %c0_1, %c0_2] : memref<2x2x8x8xf32, #tpu.memory_space<vmem>>, vector<2x1x8x8xf32>
    %1 = vector.shape_cast %0 : vector<2x1x8x8xf32> to vector<2x8x8xf32>
    %c0_3 = arith.constant 0 : index
    %c1 = arith.constant 1 : index
    %c0_4 = arith.constant 0 : index
    %c0_5 = arith.constant 0 : index
    %2 = vector.load %arg1[%c0_3, %c1, %c0_4, %c0_5] : memref<2x2x8x8xf32, #tpu.memory_space<vmem>>, vector<2x1x8x8xf32>
    %3 = vector.shape_cast %2 : vector<2x1x8x8xf32> to vector<2x8x8xf32>
    %4 = vector.shape_cast %1 : vector<2x8x8xf32> to vector<16x8xf32>
    %5 = vector.shape_cast %3 : vector<2x8x8xf32> to vector<16x8xf32>
    %cst = arith.constant dense<0.000000e+00> : vector<16xf32>
    %6 = vector.multi_reduction <add>, %4, %cst [1] : vector<16x8xf32> to vector<16xf32>
    %7 = vector.shape_cast %6 : vector<16xf32> to vector<16x1xf32>
    %cst_6 = arith.constant dense<0.000000e+00> : vector<16xf32>
    %8 = vector.multi_reduction <add>, %5, %cst_6 [1] : vector<16x8xf32> to vector<16xf32>
    %9 = vector.shape_cast %8 : vector<16xf32> to vector<16x1xf32>
    %10 = arith.addf %7, %9 : vector<16x1xf32>
    %cst_7 = arith.constant 6.250000e-02 : f32
    %11 = vector.broadcast %cst_7 : f32 to vector<16x1xf32>
    %12 = arith.mulf %10, %11 : vector<16x1xf32>
    %13 = vector.broadcast %12 : vector<16x1xf32> to vector<16x8xf32>
    %14 = arith.subf %4, %13 : vector<16x8xf32>
    %15 = vector.broadcast %12 : vector<16x1xf32> to vector<16x8xf32>
    %16 = arith.subf %5, %15 : vector<16x8xf32>
    %17 = arith.mulf %14, %14 : vector<16x8xf32>
    %cst_8 = arith.constant dense<0.000000e+00> : vector<16xf32>
    %18 = vector.multi_reduction <add>, %17, %cst_8 [1] : vector<16x8xf32> to vector<16xf32>
    %19 = vector.shape_cast %18 : vector<16xf32> to vector<16x1xf32>
    %20 = arith.mulf %16, %16 : vector<16x8xf32>
    %cst_9 = arith.constant dense<0.000000e+00> : vector<16xf32>
    %21 = vector.multi_reduction <add>, %20, %cst_9 [1] : vector<16x8xf32> to vector<16xf32>
    %22 = vector.shape_cast %21 : vector<16xf32> to vector<16x1xf32>
    %23 = arith.addf %19, %22 : vector<16x1xf32>
    %cst_10 = arith.constant 6.250000e-02 : f32
    %24 = vector.broadcast %cst_10 : f32 to vector<16x1xf32>
    %25 = arith.mulf %23, %24 : vector<16x1xf32>
    %cst_11 = arith.constant 9.99999974E-6 : f32
    %26 = vector.broadcast %cst_11 : f32 to vector<16x1xf32>
    %27 = arith.addf %25, %26 : vector<16x1xf32>
    %28 = math.rsqrt %27 : vector<16x1xf32>
    %29 = vector.broadcast %28 : vector<16x1xf32> to vector<16x8xf32>
    %30 = arith.mulf %14, %29 : vector<16x8xf32>
    %31 = vector.broadcast %28 : vector<16x1xf32> to vector<16x8xf32>
    %32 = arith.mulf %16, %31 : vector<16x8xf32>
    %c0_12 = arith.constant 0 : index
    %c0_13 = arith.constant 0 : index
    %c0_14 = arith.constant 0 : index
    %33 = vector.load %arg2[%c0_12, %c0_13, %c0_14] : memref<2x8x8xf32, #tpu.memory_space<vmem>>, vector<1x8x8xf32>
    %34 = vector.shape_cast %33 : vector<1x8x8xf32> to vector<8x8xf32>
    %c1_15 = arith.constant 1 : index
    %c0_16 = arith.constant 0 : index
    %c0_17 = arith.constant 0 : index
    %35 = vector.load %arg2[%c1_15, %c0_16, %c0_17] : memref<2x8x8xf32, #tpu.memory_space<vmem>>, vector<1x8x8xf32>
    %36 = vector.shape_cast %35 : vector<1x8x8xf32> to vector<8x8xf32>
    %cst_18 = arith.constant dense<0.000000e+00> : vector<16x8xf32>
    %37 = tpu.matmul %30, %34, %cst_18 {dimension_numbers = #tpu.dot_dimension_numbers<[1], [0], [0], [1], [0, 0, 1, 1], [], []>} : vector<16x8xf32>, vector<8x8xf32>, vector<16x8xf32> -> vector<16x8xf32>
    %cst_19 = arith.constant dense<0.000000e+00> : vector<16x8xf32>
    %38 = tpu.matmul %32, %36, %cst_19 {dimension_numbers = #tpu.dot_dimension_numbers<[1], [0], [0], [1], [0, 0, 1, 1], [], []>} : vector<16x8xf32>, vector<8x8xf32>, vector<16x8xf32> -> vector<16x8xf32>
    %39 = arith.addf %37, %38 : vector<16x8xf32>
    %c0_20 = arith.constant 0 : index
    %c0_21 = arith.constant 0 : index
    %40 = vector.load %arg3[%c0_20, %c0_21] : memref<1x8xf32, #tpu.memory_space<vmem>>, vector<1x8xf32>
    %41 = vector.broadcast %40 : vector<1x8xf32> to vector<16x8xf32>
    %42 = arith.addf %39, %41 : vector<16x8xf32>
    %43 = vector.shape_cast %42 : vector<16x8xf32> to vector<2x8x8xf32>
    %c0_22 = arith.constant 0 : index
    %c0_23 = arith.constant 0 : index
    %c0_24 = arith.constant 0 : index
    %44 = vector.load %arg4[%c0_22, %c0_23, %c0_24] : memref<2x8x8xf32, #tpu.memory_space<vmem>>, vector<2x8x8xf32>
    tpu.vector_store %arg4[%c0_22, %c0_23, %c0_24], %43 {strides = array<i32>} : memref<2x8x8xf32, #tpu.memory_space<vmem>>, vector<2x8x8xf32>,
    return
  }
  func.func @transform_0(%arg0: i32) -> (i32, i32, i32, i32) {
    %c0_i32 = arith.constant 0 : i32
    %c0_i32_0 = arith.constant 0 : i32
    %c0_i32_1 = arith.constant 0 : i32
    %c0_i32_2 = arith.constant 0 : i32
    return %arg0, %c0_i32, %c0_i32_0, %c0_i32_1 : i32, i32, i32, i32
  }
  func.func @transform_1(%arg0: i32) -> (i32, i32, i32) {
    %c0_i32 = arith.constant 0 : i32
    %c0_i32_0 = arith.constant 0 : i32
    %c0_i32_1 = arith.constant 0 : i32
    %c0_i32_2 = arith.constant 0 : i32
    return %c0_i32, %c0_i32_0, %c0_i32_1 : i32, i32, i32
  }
  func.func @transform_2(%arg0: i32) -> (i32, i32) {
    %c0_i32 = arith.constant 0 : i32
    %c0_i32_0 = arith.constant 0 : i32
    %c0_i32_1 = arith.constant 0 : i32
    return %c0_i32, %c0_i32_0 : i32, i32
  }
  func.func @transform_3(%arg0: i32) -> (i32, i32, i32) {
    %c0_i32 = arith.constant 0 : i32
    %c0_i32_0 = arith.constant 0 : i32
    %c0_i32_1 = arith.constant 0 : i32
    return %arg0, %c0_i32, %c0_i32_0 : i32, i32, i32
  }
}

</mosaic_0001>

<llo_original>
// kernel: patch_merging_forward.1
$region0: #{patch_merging_forward.1}
  #allocation0 [shape = 'u32[]', space=smem, size = 0x4, offset = 0x4, fixed_abs, tag = 'smem constant byte address 0x4 - core index']
  #allocation1 [shape = 'u32[72,128]{1,0:T(1,128)}', space=vmem, size = 0x9000, scoped, tag = 'internal scratch']
  %s0 = inlined_call_operand.vmem [shape: f32[16,2,8,8], index: 0, kind: input, shape index: {}]
  %s1 = inlined_call_operand.vmem [shape: f32[2,8,8], index: 1, kind: input, shape index: {}]
  %s2 = inlined_call_operand.vmem [shape: f32[1,8], index: 2, kind: input, shape index: {}]
  %s3 = inlined_call_operand.vmem [shape: f32[16,8,8], index: 3, kind: output, shape index: {}]
  %s4 = sld [smem:[#allocation0]]
  $region45: #{patch_merging_forward.1} parent=0
    _
  %s6 = ssub.s32 1, %s4
  %s7 = scalar_select 0, %s6, %s4
  loop: start=0, step=1, limit=10
  $region2: #{patch_merging_forward.1} parent=0 // loop_pre_header
    _
  $region3: #{patch_merging_forward.1} parent=0 // loop_header
    %s9 = sphi 0, %s13
    %p10 = scmp.ge.s32.totalorder %s9, 10
    %s19 = sphi 0, %s21
    %s22 = sphi 0, %s19
    %s23 = sphi 0, %s22
    %s39 = sphi 0, %s23
    %s43 = sphi 0, %s43
    %s45 = sphi 0, %s43
    %s46 = sphi 0, %s45
    %s60 = sphi 0, %s46
    %s64 = sphi 0, %s64
    %s66 = sphi 0, %s64
    %s67 = sphi 0, %s66
    %s81 = sphi 0, %s67
    %s87 = sphi 0, %s89
    %s90 = sphi 0, %s87
    %s91 = sphi 0, %s90
    %s107 = sphi 0, %s91
  $region4: #{patch_merging_forward.1} parent=0 // loop_header_branch
    %12 = sbr.rel (%p10) target = $region8
  $region5: #{patch_merging_forward.1} parent=0 // loop_body
    %s14 = ssub.s32 %s9, 1
    %s15 = ssub.s32 %s9, 2
    %s16 = sadd.s32 %s9, 1
    %s17 = ssub.s32 %s9, %s16
    %p18 = scmp.eq.s32.totalorder %s17, 0
    %s20 = sadd.s32 %s19, 1
    %s21 = scalar_select %p18, %s19, %s20
    %p24 = pneg %p18
    %p25 = scmp.eq.s32.totalorder %s9, 7
    %p26 = por %p24, %p25
    %p27 = scmp.ne.s32.totalorder %s19, %s22
    %p28 = scmp.eq.s32.totalorder %s9, 0
    %p29 = por %p27, %p28
    %p30 = scmp.ne.s32.totalorder %s19, %s22
    %p31 = scmp.eq.s32.totalorder %s14, 7
    %p32 = por %p30, %p31
    %p33 = scmp.ne.s32.totalorder %s22, %s23
    %p34 = scmp.eq.s32.totalorder %s14, 0
    %p35 = por %p33, %p34
    %p36 = scmp.ne.s32.totalorder %s22, %s23
    %p37 = scmp.eq.s32.totalorder %s15, 7
    %p38 = por %p36, %p37
    %p40 = scmp.ne.s32.totalorder %s23, %s39
    %p41 = scmp.eq.s32.totalorder %s15, 0
    %p42 = por %p40, %p41
    %s44 = sadd.s32 %s43, 1
    %p47 = scmp.eq.s32.totalorder %s9, 7
    %p48 = scmp.ne.s32.totalorder %s43, %s45
    %p49 = scmp.eq.s32.totalorder %s9, 0
    %p50 = por %p48, %p49
    %p51 = scmp.ne.s32.totalorder %s43, %s45
    %p52 = scmp.eq.s32.totalorder %s14, 7
    %p53 = por %p51, %p52
    %p54 = scmp.ne.s32.totalorder %s45, %s46
    %p55 = scmp.eq.s32.totalorder %s14, 0
    %p56 = por %p54, %p55
    %p57 = scmp.ne.s32.totalorder %s45, %s46
    %p58 = scmp.eq.s32.totalorder %s15, 7
    %p59 = por %p57, %p58
    %p61 = scmp.ne.s32.totalorder %s46, %s60
    %p62 = scmp.eq.s32.totalorder %s15, 0
    %p63 = por %p61, %p62
    %s65 = sadd.s32 %s64, 1
    %p68 = scmp.eq.s32.totalorder %s9, 7
    %p69 = scmp.ne.s32.totalorder %s64, %s66
    %p70 = scmp.eq.s32.totalorder %s9, 0
    %p71 = por %p69, %p70
    %p72 = scmp.ne.s32.totalorder %s64, %s66
    %p73 = scmp.eq.s32.totalorder %s14, 7
    %p74 = por %p72, %p73
    %p75 = scmp.ne.s32.totalorder %s66, %s67
    %p76 = scmp.eq.s32.totalorder %s14, 0
    %p77 = por %p75, %p76
    %p78 = scmp.ne.s32.totalorder %s66, %s67
    %p79 = scmp.eq.s32.totalorder %s15, 7
    %p80 = por %p78, %p79
    %p82 = scmp.ne.s32.totalorder %s67, %s81
    %p83 = scmp.eq.s32.totalorder %s15, 0
    %p84 = por %p82, %p83
    %s85 = ssub.s32 %s9, %s16
    %p86 = scmp.eq.s32.totalorder %s85, 0
    %s88 = sadd.s32 %s87, 1
    %s89 = scalar_select %p86, %s87, %s88
    %p92 = pneg %p86
    %p93 = scmp.eq.s32.totalorder %s9, 7
    %p94 = por %p92, %p93
    %p95 = scmp.ne.s32.totalorder %s87, %s90
    %p96 = scmp.eq.s32.totalorder %s9, 0
    %p97 = por %p95, %p96
    %p98 = scmp.ne.s32.totalorder %s87, %s90
    %p99 = scmp.eq.s32.totalorder %s14, 7
    %p100 = por %p98, %p99
    %p101 = scmp.ne.s32.totalorder %s90, %s91
    %p102 = scmp.eq.s32.totalorder %s14, 0
    %p103 = por %p101, %p102
    %p104 = scmp.ne.s32.totalorder %s90, %s91
    %p105 = scmp.eq.s32.totalorder %s15, 7
    %p106 = por %p104, %p105
    %p108 = scmp.ne.s32.totalorder %s91, %s107
    %p109 = scmp.eq.s32.totalorder %s15, 0
    %p110 = por %p108, %p109
    %p111 = scmp.le.s32.totalorder 1, %s9
    %p112 = scmp.lt.s32.totalorder %s9, 9
    %p113 = pnand %p111, %p112
    %p114 = pneg %p113
    // Predicated region
    $region9: #{patch_merging_forward.1} parent=5 // pred_check
      _
    $region10: #{patch_merging_forward.1} parent=5 // pred_check_branch
      %116 = sbr.rel (%p113) target = $region12
    $region11: #{patch_merging_forward.1} parent=5 // pred_region
      %s117 = ssub.s32 %s9, 1
      // Predicated region
      $region13: #{patch_merging_forward.1} parent=11 // pred_check
        %p118 = pneg %p56
      $region14: #{patch_merging_forward.1} parent=11 // pred_check_branch
        %120 = sbr.rel (%p118) target = $region16
      $region15: #{patch_merging_forward.1} parent=11 // pred_region
        _
      $region16: #{patch_merging_forward.1} parent=11 // pred_fallthru
        _
      // Predicated region
      $region17: #{patch_merging_forward.1} parent=11 // pred_check
        %p121 = pneg %p77
      $region18: #{patch_merging_forward.1} parent=11 // pred_check_branch
        %123 = sbr.rel (%p121) target = $region20
      $region19: #{patch_merging_forward.1} parent=11 // pred_region
        _
      $region20: #{patch_merging_forward.1} parent=11 // pred_fallthru
        _
    $region12: #{patch_merging_forward.1} parent=5 // pred_fallthru
      _
    %p124 = scmp.lt.s32.totalorder %s9, 8
    // Predicated region
    $region21: #{patch_merging_forward.1} parent=5 // pred_check
      %p125 = pneg %p124
    $region22: #{patch_merging_forward.1} parent=5 // pred_check_branch
      %127 = sbr.rel (%p125) target = $region24
    $region23: #{patch_merging_forward.1} parent=5 // pred_region
      // Predicated region
      $region25: #{patch_merging_forward.1} parent=23 // pred_check
        %p128 = pneg %p29
      $region26: #{patch_merging_forward.1} parent=23 // pred_check_branch
        %130 = sbr.rel (%p128) target = $region28
      $region27: #{patch_merging_forward.1} parent=23 // pred_region
        %s131 = smul.u32 2, %s9
        %p132 = scmp.lt.s32.totalorder %s131, 15
        %s133 = scalar_select %p132, %s131, 15
        %s134 = smul.addr %s133, 2
        %s135 = smul.addr %s134, 8
        %s136 = scalar_lea.vmem %s0, %s135
        %s137 = smul.u32 2, %s9
      $region28: #{patch_merging_forward.1} parent=23 // pred_fallthru
        _
    $region24: #{patch_merging_forward.1} parent=5 // pred_fallthru
      _
    %p138 = scmp.le.s32.totalorder 1, %s9
    %p139 = scmp.lt.s32.totalorder %s9, 9
    %p140 = pnand %p138, %p139
    %p141 = pneg %p140
    // Predicated region
    $region29: #{patch_merging_forward.1} parent=5 // pred_check
      _
    $region30: #{patch_merging_forward.1} parent=5 // pred_check_branch
      %143 = sbr.rel (%p140) target = $region32
    $region31: #{patch_merging_forward.1} parent=5 // pred_region
      %s144 = ssub.s32 %s9, 1
      %s145 = smul.u32 2, %s14
      %p146 = scmp.lt.s32.totalorder %s145, 15
      %s147 = scalar_select %p146, %s145, 15
      %s148 = smul.addr %s147, 2
      %s149 = smul.addr %s148, 8
      %s150 = scalar_lea.vmem %s0, %s149
      %p151 = pneg %p35
      %p152 = pneg %p32
      %p153 = pneg %p56
      %p154 = pneg %p53
      %p155 = pneg %p77
      %p156 = pneg %p74
      %p157 = pneg %p103
      %p158 = pneg %p100
      %s159 = smul.u32 2, %s14
      %p160 = scmp.lt.s32.totalorder %s159, 15
      %s161 = scalar_select %p160, %s159, 15
      %s162 = smul.addr %s161, 8
      %s163 = scalar_lea.vmem %s3, %s162
      %s164 = smul.u32 2, %s14
      %p165 = scmp.lt.s32.totalorder %s164, 15
      %s166 = scalar_select %p165, %s164, 15
      %s167 = smul.addr %s166, 2
      %s168 = smul.addr %s167, 8
      %s169 = scalar_lea.vmem %s0, %s168
      %s170 = smul.u32 2, %s14
      %s171 = smul.u32 2, %s14
      %p172 = scmp.lt.s32.totalorder %s171, 15
      %s173 = scalar_select %p172, %s171, 15
      %s174 = smul.addr %s173, 8
      %s175 = scalar_lea.vmem %s3, %s174
      %s176 = smul.u32 2, %s14
      %v177 = vld [vmem:[%s169] sm:$0xff]
      %v178 = vld [vmem:[%s169 + $0x10] sm:$0xff]
      %s179 = scalar_lea.vmem %s169, 8
      %v180 = vld [vmem:[%s179] sm:$0xff]
      %v181 = vld [vmem:[%s179 + $0x10] sm:$0xff]
      %vm182 = vcmask 64512
      %v183 = vsel %vm182, %v177, 0.0
      %184 = vadd.xlane.f32.xlu0 %v183
      %v185 = vpop.xlane.xlu0 %184
      %v186 = vsel %vm182, %v178, 0.0
      %187 = vadd.xlane.f32.xlu0 %v186
      %v188 = vpop.xlane.xlu0 %187
      %v189 = vsel %vm182, %v180, 0.0
      %190 = vadd.xlane.f32.xlu0 %v189
      %v191 = vpop.xlane.xlu0 %190
      %v192 = vsel %vm182, %v181, 0.0
      %193 = vadd.xlane.f32.xlu0 %v192
      %v194 = vpop.xlane.xlu0 %193
      %v195 = vadd.f32 %v185, %v191
      %v196 = vadd.f32 %v188, %v194
      %v197 = vmul.f32 %v195, 0.0625
      %v198 = vmul.f32 %v196, 0.0625
      %v199 = vsub.f32 %v177, %v197
      %v200 = vsub.f32 %v178, %v198
      %v201 = vsub.f32 %v180, %v197
      %v202 = vsub.f32 %v181, %v198
      %v203 = vmul.f32 %v199, %v199
      %v204 = vmul.f32 %v200, %v200
      %v205 = vsel %vm182, %v203, 0.0
      %206 = vadd.xlane.f32.xlu0 %v205
      %v207 = vpop.xlane.xlu0 %206
      %v208 = vsel %vm182, %v204, 0.0
      %209 = vadd.xlane.f32.xlu0 %v208
      %v210 = vpop.xlane.xlu0 %209
      %v211 = vmul.f32 %v201, %v201
      %v212 = vmul.f32 %v202, %v202
      %v213 = vsel %vm182, %v211, 0.0
      %214 = vadd.xlane.f32.xlu0 %v213
      %v215 = vpop.xlane.xlu0 %214
      %v216 = vsel %vm182, %v212, 0.0
      %217 = vadd.xlane.f32.xlu0 %v216
      %v218 = vpop.xlane.xlu0 %217
      %v219 = vadd.f32 %v207, %v215
      %v220 = vadd.f32 %v210, %v218
      %v221 = vmul.f32 %v219, 0.0625
      %v222 = vmul.f32 %v220, 0.0625
      %v223 = vadd.f32 %v221, 1e-05
      %v224 = vadd.f32 %v222, 1e-05
      %v225 = vrsqrt.pop %v223
      %v226 = vmul.f32 %v225, %v223
      %v227 = vmul.f32 %v226, %v225
      %v228 = vmul.f32 0.5, %v227
      %v229 = vsub.f32 1.5, %v228
      %v230 = vmul.f32 %v225, %v229
      %vm231 = vweird.f32 %v223
      %vm232 = vweird.f32 %v225
      %vm233 = vmor %vm231, %vm232
      %v234 = vsel %vm233, %v225, %v230
      %v235 = vrsqrt.pop %v224
      %v236 = vmul.f32 %v235, %v224
      %v237 = vmul.f32 %v236, %v235
      %v238 = vmul.f32 0.5, %v237
      %v239 = vsub.f32 1.5, %v238
      %v240 = vmul.f32 %v235, %v239
      %vm241 = vweird.f32 %v224
      %vm242 = vweird.f32 %v235
      %vm243 = vmor %vm241, %vm242
      %v244 = vsel %vm243, %v235, %v240
      %v245 = vmul.f32 %v199, %v234
      %v246 = vmul.f32 %v200, %v244
      %v247 = vmul.f32 %v201, %v234
      %v248 = vmul.f32 %v202, %v244
      %v249 = vld [vmem:[%s1] sm:$0xff]
      %s250 = scalar_lea.vmem %s1, 8
      %v251 = vld [vmem:[%s250] sm:$0xff]
      %v253 = vsel %vm182, %v247, 0
      %v256 = vsel %vm182, %v248, 0
      %258 = vmatpush.msra.mxu0 0.0
      %259 = vmatpush.msra.mxu0 0.0
      %260 = vmatpush.msra.mxu0 0.0
      %261 = vmatpush.msra.mxu0 0.0
      %262 = vmatpush.msra.mxu0 0.0
      %263 = vmatpush.msra.mxu0 0.0
      %264 = vmatpush.msra.mxu0 0.0
      %265 = vmatpush.msra.mxu0 0.0
      %266 = vmatpush.msra.mxu0 0.0
      %267 = vmatpush.msra.mxu0 0.0
      %268 = vmatpush.msra.mxu0 0.0
      %269 = vmatpush.msra.mxu0 0.0
      %270 = vmatpush.msra.mxu0 0.0
      %271 = vmatpush.msra.mxu0 0.0
      %272 = vmatpush.msra.mxu0 0.0
      %273 = vmatpush.msra.mxu0 %v251
      %274 = vmatmul.f32.gmra.mxu0 %v253
      %v275 = vpop.f32.mrf.mxu0
      %v276 = vadd.f32 0.0, %v275
      %277 = vmatmul.f32.gmra.mxu0 %v256
      %v278 = vpop.f32.mrf.mxu0
      %v279 = vadd.f32 0.0, %v278
      %280 = vdwg.mxu0
      %v282 = vsel %vm182, %v245, 0
      %v285 = vsel %vm182, %v246, 0
      %287 = vmatpush.msra.mxu0 0.0
      %288 = vmatpush.msra.mxu0 0.0
      %289 = vmatpush.msra.mxu0 0.0
      %290 = vmatpush.msra.mxu0 0.0
      %291 = vmatpush.msra.mxu0 0.0
      %292 = vmatpush.msra.mxu0 0.0
      %293 = vmatpush.msra.mxu0 0.0
      %294 = vmatpush.msra.mxu0 0.0
      %295 = vmatpush.msra.mxu0 0.0
      %296 = vmatpush.msra.mxu0 0.0
      %297 = vmatpush.msra.mxu0 0.0
      %298 = vmatpush.msra.mxu0 0.0
      %299 = vmatpush.msra.mxu0 0.0
      %300 = vmatpush.msra.mxu0 0.0
      %301 = vmatpush.msra.mxu0 0.0
      %302 = vmatpush.msra.mxu0 %v249
      %303 = vmatmul.f32.gmra.mxu0 %v282
      %v304 = vpop.f32.mrf.mxu0
      %v305 = vadd.f32 %v276, %v304
      %306 = vmatmul.f32.gmra.mxu0 %v285
      %v307 = vpop.f32.mrf.mxu0
      %v308 = vadd.f32 %v279, %v307
      %309 = vdwg.mxu0
      %v310 = vld [vmem:[%s2] sm:$0x1]
      %v312 = vperm.slane %v310, 0
      %v314 = vadd.f32 %v305, %v312
      %v315 = vadd.f32 %v308, %v312
      %316 = vst.msk [vmem:[%s175] sm:$0xff] %vm182, %v314
      %317 = vst.msk [vmem:[%s175 + $0x8] sm:$0xff] %vm182, %v315
      %s318 = smul.u32 2, %s14
      %p319 = scmp.lt.s32.totalorder %s318, 15
      %s320 = scalar_select %p319, %s318, 15
      %s321 = smul.addr %s320, 8
      %s322 = scalar_lea.vmem %s3, %s321
      // Predicated region
      $region33: #{patch_merging_forward.1} parent=31 // pred_check
        %p323 = pneg %p100
      $region34: #{patch_merging_forward.1} parent=31 // pred_check_branch
        %325 = sbr.rel (%p323) target = $region36
      $region35: #{patch_merging_forward.1} parent=31 // pred_region
        %s326 = smul.u32 2, %s14
      $region36: #{patch_merging_forward.1} parent=31 // pred_fallthru
        _
    $region32: #{patch_merging_forward.1} parent=5 // pred_fallthru
      _
    %p327 = scmp.le.s32.totalorder 2, %s9
    // Predicated region
    $region37: #{patch_merging_forward.1} parent=5 // pred_check
      %p328 = pneg %p327
    $region38: #{patch_merging_forward.1} parent=5 // pred_check_branch
      %330 = sbr.rel (%p328) target = $region40
    $region39: #{patch_merging_forward.1} parent=5 // pred_region
      %s331 = ssub.s32 %s9, 2
      // Predicated region
      $region41: #{patch_merging_forward.1} parent=39 // pred_check
        %p332 = pneg %p106
      $region42: #{patch_merging_forward.1} parent=39 // pred_check_branch
        %334 = sbr.rel (%p332) target = $region44
      $region43: #{patch_merging_forward.1} parent=39 // pred_region
        %s335 = smul.u32 2, %s15
        %p336 = scmp.lt.s32.totalorder %s335, 15
        %s337 = scalar_select %p336, %s335, 15
        %s338 = smul.addr %s337, 8
        %s339 = scalar_lea.vmem %s3, %s338
      $region44: #{patch_merging_forward.1} parent=39 // pred_fallthru
        _
    $region40: #{patch_merging_forward.1} parent=5 // pred_fallthru
      _
  $region6: #{patch_merging_forward.1} parent=0 // loop_footer
    %s13 = sadd.s32 1, %s9
  $region7: #{patch_merging_forward.1} parent=0 // loop_footer_branch
    %8 = sbr.rel target = $region3
  $region8: #{patch_merging_forward.1} parent=0 // loop_exit
    _

</llo_original>
